<compile_context>
chip_gen: v5e
topology: v5e:2x2
jax: 0.10.0
libtpu: 0.0.40
codegen_flags: <defaults>
</compile_context>

<pallas_src>
import numpy as np
import jax
import jax.numpy as jnp
from jax import lax
from jax.experimental import pallas as pl
from jax.experimental.pallas import tpu as pltpu

EPS = 1e-5  # BatchNorm2d eps (PyTorch default)


# ------------------------------ Pallas kernel --------------------------------
def _dpe_kernel(x0e_ref, x0o_ref, x1_ref, x2_ref,
                w_adj2_ref, w_up2_ref, w_adj1_ref,
                a_dn_odd_ref, a_dn_even_ref, w_up3_ref,
                bias_ref,
                out_ref,
                shift_ref):
    """Entire DPE forward on lane-dense planar (H, N*W*C) tiles (f32, all in VMEM)."""
    f32 = jnp.float32
    H2 = x1_ref.shape[0]          # number of output rows
    H3 = x2_ref.shape[0]

    def bias_row(i, width):
        return bias_ref[pl.ds(i, 1), pl.ds(0, width)]            # (1, width)

    def conv_silu(x, w_ref, bias_idx):
        y = jnp.dot(x, w_ref[...], preferred_element_type=f32)   # BN scale folded into W
        y = y + bias_row(bias_idx, y.shape[-1])
        return y * jax.nn.sigmoid(y)                             # SiLU

    # --- p2 path: adjust_channel_forp2, then up_forp2's 1x1 conv at low res ---
    x_p2 = conv_silu(x1_ref[...], w_adj2_ref, 0)                 # (H2, N*W2*C)
    t_p2 = conv_silu(x_p2, w_up2_ref, 1)                         # (H2, N*W1*C)  (W-dup folded in weight)

    # --- p1 path in even/odd output-row halves (H-upsample of t_p2 == row reuse) ---
    xp1_even = conv_silu(x0e_ref[...], w_adj1_ref, 2) + t_p2     # rows 0,2,4,... of x_p1
    xp1_odd  = conv_silu(x0o_ref[...], w_adj1_ref, 2) + t_p2     # rows 1,3,5,... of x_p1

    # --- down: 3x3 stride-2 pad-1 conv.
    #     Row taps: kh=1 -> even rows; kh=2 -> odd rows; kh=0 -> odd rows shifted
    #     down by one output row (zero top-pad row).
    q_odd  = jnp.dot(xp1_odd,  a_dn_odd_ref[...],  preferred_element_type=f32)  # (H2, 2*L) = [kh0 | kh2]
    q_even = jnp.dot(xp1_even, a_dn_even_ref[...], preferred_element_type=f32)  # (H2, L)
    lout = q_even.shape[-1]
    q0 = q_odd[:, :lout]
    q2 = q_odd[:, lout:]
    # shift q0 down one row with a zero top row, via a tiny VMEM scratch
    shift_ref[pl.ds(0, 1), :] = jnp.zeros((1, lout), f32)
    shift_ref[pl.ds(1, H2), :] = q0
    q0s = shift_ref[pl.ds(0, H2), :]
    y = q0s + q_even + q2 + bias_row(3, lout)
    down = y * jax.nn.sigmoid(y)                                  # (H2, L)

    # --- p3 path: up_forp3's 1x1 conv at low res; H-upsample fused into the store ---
    t_p3 = conv_silu(x2_ref[...], w_up3_ref, 4)                   # (H3, L)
    base = down + x_p2                                            # (H2, L)
    for i in range(H3):                                           # each low-res row -> 2 output rows
        out_ref[pl.ds(2 * i, 2), :] = (base[2 * i:2 * i + 2, :]
                                       + t_p3[i:i + 1, :]).astype(out_ref.dtype)


# ------------------- one-time host-side planar weight build -------------------
def _planar_1x1(w_io, n_pos):
    """(Cin,Cout) 1x1 weight -> block-diagonal (n_pos*Cin, n_pos*Cout) planar weight."""
    return np.kron(np.eye(n_pos, dtype=np.float32), w_io)


def _planar_1x1_upw(w_io, n, w_in):
    """1x1 conv + nearest-2x W-upsample folded: (n*w_in*Cin, n*2*w_in*Cout)."""
    dup = np.repeat(np.eye(w_in, dtype=np.float32), 2, axis=1)    # dup[wi, wo] = (wo // 2 == wi)
    return np.kron(np.eye(n, dtype=np.float32), np.kron(dup, w_io))


def _planar_down(w_hwio, n, w_in):
    """3x3 stride-2 pad-1 conv in the (H, N*W*C) layout.

    Returns (A_odd, A_even) so that with L = n*(w_in//2)*Cout:
      down_pre = shift_down(xp1_odd @ A_odd[:, :L]) + xp1_even @ A_even + xp1_odd @ A_odd[:, L:]
    i.e. A_odd = [A_{kh=0} | A_{kh=2}], A_even = A_{kh=1}.
    """
    w_out = w_in // 2
    cin, cout = w_hwio.shape[2], w_hwio.shape[3]

    def a_for(kh):
        a = np.zeros((w_in * cin, w_out * cout), np.float32)
        for kw in range(3):
            p = np.zeros((w_in, w_out), np.float32)
            for wo in range(w_out):
                wi = 2 * wo + kw - 1
                if 0 <= wi < w_in:
                    p[wi, wo] = 1.0
            a += np.kron(p, w_hwio[kh, kw])
        return np.kron(np.eye(n, dtype=np.float32), a)

    a_odd = np.concatenate([a_for(0), a_for(2)], axis=1)
    return a_odd, a_for(1)


def prepare_dpe(params, n, w1, w2, w3):
    """Build all planar constants once (BN scale folded into weights)."""
    def fold(name):
        p = params[name]
        w = np.asarray(p["w"], np.float32) * np.asarray(p["scale"], np.float32).reshape(1, 1, 1, -1)
        return w, np.asarray(p["bias"], np.float32)

    w_adj2, b_adj2 = fold("adj_p2")
    w_up2,  b_up2  = fold("up_p2")
    w_adj1, b_adj1 = fold("adj_p1")
    w_dn,   b_dn   = fold("down")
    w_up3,  b_up3  = fold("up_p3")

    a_odd, a_even = _planar_down(w_dn, n, w1)

    bias_rows = [np.tile(b_adj2, n * w2),   # 0: adjust_channel_forp2
                 np.tile(b_up2,  n * w1),   # 1: up_forp2 conv
                 np.tile(b_adj1, n * w1),   # 2: adjust_channel_forp1
                 np.tile(b_dn,   n * w2),   # 3: down
                 np.tile(b_up3,  n * w2)]   # 4: up_forp3 conv
    width = max(r.size for r in bias_rows)
    bias_pack = np.zeros((8, width), np.float32)
    for i, r in enumerate(bias_rows):
        bias_pack[i, :r.size] = r

    return {
        "w_adj2":    jnp.asarray(_planar_1x1(w_adj2[0, 0], n * w2)),
        "w_up2":     jnp.asarray(_planar_1x1_upw(w_up2[0, 0], n, w2)),
        "w_adj1":    jnp.asarray(_planar_1x1(w_adj1[0, 0], n * w1)),
        "a_dn_odd":  jnp.asarray(a_odd),
        "a_dn_even": jnp.asarray(a_even),
        "w_up3":     jnp.asarray(_planar_1x1_upw(w_up3[0, 0], n, w3)),
        "bias":      jnp.asarray(bias_pack),
    }


# --------------------------------- parameters ---------------------------------
def make_conv_params(key, cin, cout, k):
    w = jax.random.normal(key, (k, k, cin, cout), jnp.float32) * 0.1
    # BatchNorm2d at PyTorch init (eval semantics): gamma=1, beta=0, mean=0, var=1
    gamma = jnp.ones((cout,), jnp.float32)
    beta = jnp.zeros((cout,), jnp.float32)
    mean = jnp.zeros((cout,), jnp.float32)
    var = jnp.ones((cout,), jnp.float32)
    scale = gamma / jnp.sqrt(var + EPS)
    bias = beta - mean * scale
    return {"w": w, "scale": scale, "bias": bias}


def init_dpe_params(key, c1, c2):
    ks = jax.random.split(key, 6)
    return {
        "adj_p1": make_conv_params(ks[0], c1[0], c2, 1),
        "adj_p2": make_conv_params(ks[1], c1[1], c2, 1),
        "up_p2":  make_conv_params(ks[2], c2, c2, 1),
        "up_p3":  make_conv_params(ks[3], c1[2], c2, 1),
        "down":   make_conv_params(ks[4], c2, c2, 3),
        "middle": make_conv_params(ks[5], c2, c2, 1),  # defined in __init__, unused in forward
    }


# --------------------------------- DPE forward --------------------------------
def _planar(x_nhwc):
    """NHWC -> lane-dense planar (H, N*W*C)."""
    n, h, w, c = x_nhwc.shape
    return jnp.transpose(x_nhwc, (1, 0, 2, 3)).reshape(h, n * w * c)


def dpe_forward(consts, x0_nhwc, x1_nhwc, x2_nhwc):
    n, h1, w1, _ = x0_nhwc.shape
    _, h2, w2, _ = x1_nhwc.shape
    _, h3, w3, _ = x2_nhwc.shape
    c2 = consts["a_dn_even"].shape[1] // (n * w2)
    lout = n * w2 * c2

    x0p = _planar(x0_nhwc)
    x0e, x0o = x0p[0::2], x0p[1::2]                 # even / odd rows (cheap wrapper slices)
    x1p, x2p = _planar(x1_nhwc), _planar(x2_nhwc)

    inputs = (x0e, x0o, x1p, x2p,
              consts["w_adj2"], consts["w_up2"], consts["w_adj1"],
              consts["a_dn_odd"], consts["a_dn_even"], consts["w_up3"],
              consts["bias"])

    def full_spec(arr):
        return pl.BlockSpec(tuple(arr.shape), lambda i, nd=arr.ndim: (0,) * nd)

    out_planar = pl.pallas_call(
        _dpe_kernel,
        out_shape=jax.ShapeDtypeStruct((h2, lout), jnp.float32),
        grid=(1,),                                   # whole problem = one block
        in_specs=[full_spec(a) for a in inputs],
        out_specs=pl.BlockSpec((h2, lout), lambda i: (0, 0)),
        scratch_shapes=[pltpu.VMEM((h2 + 8, lout), jnp.float32)],
        compiler_params=pltpu.CompilerParams(
            dimension_semantics=("arbitrary",)),
    )(*inputs)

    return jnp.transpose(out_planar.reshape(h2, n, w2, c2), (1, 0, 2, 3))


# ------------------------------- pure-JAX reference ----------------------------
def upsample2x_nearest(x_nhwc):
    return jnp.repeat(jnp.repeat(x_nhwc, 2, axis=1), 2, axis=2)


def ref_conv_bn_silu(x, w_hwio, scale, bias, stride=1, pad=0):
    y = lax.conv_general_dilated(x, w_hwio, (stride, stride),
                                 [(pad, pad), (pad, pad)],
                                 dimension_numbers=("NHWC", "HWIO", "NHWC"))
    y = y * scale + bias
    return y * jax.nn.sigmoid(y)


def dpe_reference(params, x0, x1, x2):
    p = params
    x_p2 = ref_conv_bn_silu(x1, p["adj_p2"]["w"], p["adj_p2"]["scale"], p["adj_p2"]["bias"])
    a_p1 = ref_conv_bn_silu(x0, p["adj_p1"]["w"], p["adj_p1"]["scale"], p["adj_p1"]["bias"])
    x_p1 = a_p1 + ref_conv_bn_silu(upsample2x_nearest(x_p2), p["up_p2"]["w"],
                                   p["up_p2"]["scale"], p["up_p2"]["bias"])
    x_p1 = ref_conv_bn_silu(x_p1, p["down"]["w"], p["down"]["scale"], p["down"]["bias"],
                            stride=2, pad=1)
    x_p3 = ref_conv_bn_silu(upsample2x_nearest(x2), p["up_p3"]["w"],
                            p["up_p3"]["scale"], p["up_p3"]["bias"])
    return x_p1 + x_p2 + x_p3


# ------------------------------------- main -------------------------------------
if __name__ == "__main__":
    c1 = (4, 8, 16)   # channels of x[0], x[1], x[2]
    c2 = 8            # output channels
    N = 2

    key = jax.random.PRNGKey(0)
    kp, k0, k1, k2 = jax.random.split(key, 4)
    params = init_dpe_params(kp, c1, c2)

    # PyTorch-convention NCHW inputs: x[0] 16x16, x[1] 8x8, x[2] 4x4
    x0_nchw = jax.random.normal(k0, (N, c1[0], 16, 16), jnp.float32)
    x1_nchw = jax.random.normal(k1, (N, c1[1], 8, 8), jnp.float32)
    x2_nchw = jax.random.normal(k2, (N, c1[2], 4, 4), jnp.float32)

    x0 = jnp.transpose(x0_nchw, (0, 2, 3, 1))
    x1 = jnp.transpose(x1_nchw, (0, 2, 3, 1))
    x2 = jnp.transpose(x2_nchw, (0, 2, 3, 1))

    # one-time planar constant build (hoisted out of the hot path)
    consts = prepare_dpe(params, N, 16, 8, 4)

    fwd = jax.jit(dpe_forward)
    out = jax.block_until_ready(fwd(consts, x0, x1, x2))

    ref = dpe_reference(params, x0, x1, x2)
    np.testing.assert_allclose(np.asarray(out), np.asarray(ref), rtol=1e-4, atol=1e-4)
    assert out.shape == (N, 8, 8, c2)

    print("KERNEL_OK")
</pallas_src>

<mosaic_0001>
module attributes {stable_mosaic.version = 11 : i64} {
  func.func @_dpe_kernel(%arg0: i32, %arg1: memref<8x128xf32, #tpu.memory_space<vmem>>, %arg2: memref<8x128xf32, #tpu.memory_space<vmem>>, %arg3: memref<8x128xf32, #tpu.memory_space<vmem>>, %arg4: memref<4x128xf32, #tpu.memory_space<vmem>>, %arg5: memref<128x128xf32, #tpu.memory_space<vmem>>, %arg6: memref<128x256xf32, #tpu.memory_space<vmem>>, %arg7: memref<128x256xf32, #tpu.memory_space<vmem>>, %arg8: memref<256x256xf32, #tpu.memory_space<vmem>>, %arg9: memref<256x128xf32, #tpu.memory_space<vmem>>, %arg10: memref<128x128xf32, #tpu.memory_space<vmem>>, %arg11: memref<8x256xf32, #tpu.memory_space<vmem>>, %arg12: memref<8x128xf32, #tpu.memory_space<vmem>>, %arg13: memref<16x128xf32, #tpu.memory_space<vmem>>) attributes {dimension_semantics = [#tpu.dimension_semantics<arbitrary>], iteration_bounds = array<i64: 1>, scalar_prefetch = 0 : i64, scratch_operands = 1 : i64, tpu.core_type = #tpu.core_type<tc>, window_params = [{pipeline_mode = #tpu.pipeline_mode<synchronous>, transform_indices = @transform_0, window_bounds = array<i64: 8, 128>}, {pipeline_mode = #tpu.pipeline_mode<synchronous>, transform_indices = @transform_1, window_bounds = array<i64: 8, 128>}, {pipeline_mode = #tpu.pipeline_mode<synchronous>, transform_indices = @transform_2, window_bounds = array<i64: 8, 128>}, {pipeline_mode = #tpu.pipeline_mode<synchronous>, transform_indices = @transform_3, window_bounds = array<i64: 4, 128>}, {pipeline_mode = #tpu.pipeline_mode<synchronous>, transform_indices = @transform_4, window_bounds = array<i64: 128, 128>}, {pipeline_mode = #tpu.pipeline_mode<synchronous>, transform_indices = @transform_5, window_bounds = array<i64: 128, 256>}, {pipeline_mode = #tpu.pipeline_mode<synchronous>, transform_indices = @transform_6, window_bounds = array<i64: 128, 256>}, {pipeline_mode = #tpu.pipeline_mode<synchronous>, transform_indices = @transform_7, window_bounds = array<i64: 256, 256>}, {pipeline_mode = #tpu.pipeline_mode<synchronous>, transform_indices = @transform_8, window_bounds = array<i64: 256, 128>}, {pipeline_mode = #tpu.pipeline_mode<synchronous>, transform_indices = @transform_9, window_bounds = array<i64: 128, 128>}, {pipeline_mode = #tpu.pipeline_mode<synchronous>, transform_indices = @transform_10, window_bounds = array<i64: 8, 256>}, {pipeline_mode = #tpu.pipeline_mode<synchronous>, transform_indices = @transform_11, window_bounds = array<i64: 8, 128>}]} {
    %c0 = arith.constant 0 : index
    %c0_0 = arith.constant 0 : index
    %0 = vector.load %arg3[%c0, %c0_0] : memref<8x128xf32, #tpu.memory_space<vmem>>, vector<8x128xf32>
    %c0_1 = arith.constant 0 : index
    %c0_2 = arith.constant 0 : index
    %1 = vector.load %arg5[%c0_1, %c0_2] : memref<128x128xf32, #tpu.memory_space<vmem>>, vector<128x128xf32>
    %cst = arith.constant dense<0.000000e+00> : vector<8x128xf32>
    %2 = tpu.matmul %0, %1, %cst {dimension_numbers = #tpu.dot_dimension_numbers<[1], [0], [0], [1], [0, 0, 1, 1], [], []>} : vector<8x128xf32>, vector<128x128xf32>, vector<8x128xf32> -> vector<8x128xf32>
    %c0_3 = arith.constant 0 : index
    %c0_4 = arith.constant 0 : index
    %3 = vector.load %arg11[%c0_3, %c0_4] : memref<8x256xf32, #tpu.memory_space<vmem>>, vector<1x128xf32>
    %4 = vector.broadcast %3 : vector<1x128xf32> to vector<8x128xf32>
    %5 = arith.addf %2, %4 : vector<8x128xf32>
    %6 = arith.negf %5 : vector<8x128xf32>
    %7 = math.exp %6 : vector<8x128xf32>
    %cst_5 = arith.constant 1.000000e+00 : f32
    %8 = vector.broadcast %cst_5 : f32 to vector<8x128xf32>
    %9 = arith.addf %8, %7 : vector<8x128xf32>
    %10 = arith.divf %8, %9 : vector<8x128xf32>
    %11 = arith.mulf %5, %10 : vector<8x128xf32>
    %c0_6 = arith.constant 0 : index
    %c0_7 = arith.constant 0 : index
    %12 = vector.load %arg6[%c0_6, %c0_7] : memref<128x256xf32, #tpu.memory_space<vmem>>, vector<128x256xf32>
    %cst_8 = arith.constant dense<0.000000e+00> : vector<8x256xf32>
    %13 = tpu.matmul %11, %12, %cst_8 {dimension_numbers = #tpu.dot_dimension_numbers<[1], [0], [0], [1], [0, 0, 1, 1], [], []>} : vector<8x128xf32>, vector<128x256xf32>, vector<8x256xf32> -> vector<8x256xf32>
    %c1 = arith.constant 1 : index
    %c0_9 = arith.constant 0 : index
    %14 = vector.load %arg11[%c1, %c0_9] : memref<8x256xf32, #tpu.memory_space<vmem>>, vector<1x256xf32>
    %15 = vector.broadcast %14 : vector<1x256xf32> to vector<8x256xf32>
    %16 = arith.addf %13, %15 : vector<8x256xf32>
    %17 = arith.negf %16 : vector<8x256xf32>
    %18 = math.exp %17 : vector<8x256xf32>
    %cst_10 = arith.constant 1.000000e+00 : f32
    %19 = vector.broadcast %cst_10 : f32 to vector<8x256xf32>
    %20 = arith.addf %19, %18 : vector<8x256xf32>
    %21 = arith.divf %19, %20 : vector<8x256xf32>
    %22 = arith.mulf %16, %21 : vector<8x256xf32>
    %c0_11 = arith.constant 0 : index
    %c0_12 = arith.constant 0 : index
    %23 = vector.load %arg1[%c0_11, %c0_12] : memref<8x128xf32, #tpu.memory_space<vmem>>, vector<8x128xf32>
    %c0_13 = arith.constant 0 : index
    %c0_14 = arith.constant 0 : index
    %24 = vector.load %arg7[%c0_13, %c0_14] : memref<128x256xf32, #tpu.memory_space<vmem>>, vector<128x256xf32>
    %cst_15 = arith.constant dense<0.000000e+00> : vector<8x256xf32>
    %25 = tpu.matmul %23, %24, %cst_15 {dimension_numbers = #tpu.dot_dimension_numbers<[1], [0], [0], [1], [0, 0, 1, 1], [], []>} : vector<8x128xf32>, vector<128x256xf32>, vector<8x256xf32> -> vector<8x256xf32>
    %c2 = arith.constant 2 : index
    %c0_16 = arith.constant 0 : index
    %26 = vector.load %arg11[%c2, %c0_16] : memref<8x256xf32, #tpu.memory_space<vmem>>, vector<1x256xf32>
    %27 = vector.broadcast %26 : vector<1x256xf32> to vector<8x256xf32>
    %28 = arith.addf %25, %27 : vector<8x256xf32>
    %29 = arith.negf %28 : vector<8x256xf32>
    %30 = math.exp %29 : vector<8x256xf32>
    %cst_17 = arith.constant 1.000000e+00 : f32
    %31 = vector.broadcast %cst_17 : f32 to vector<8x256xf32>
    %32 = arith.addf %31, %30 : vector<8x256xf32>
    %33 = arith.divf %31, %32 : vector<8x256xf32>
    %34 = arith.mulf %28, %33 : vector<8x256xf32>
    %35 = arith.addf %34, %22 : vector<8x256xf32>
    %c0_18 = arith.constant 0 : index
    %c0_19 = arith.constant 0 : index
    %36 = vector.load %arg2[%c0_18, %c0_19] : memref<8x128xf32, #tpu.memory_space<vmem>>, vector<8x128xf32>
    %c0_20 = arith.constant 0 : index
    %c0_21 = arith.constant 0 : index
    %37 = vector.load %arg7[%c0_20, %c0_21] : memref<128x256xf32, #tpu.memory_space<vmem>>, vector<128x256xf32>
    %cst_22 = arith.constant dense<0.000000e+00> : vector<8x256xf32>
    %38 = tpu.matmul %36, %37, %cst_22 {dimension_numbers = #tpu.dot_dimension_numbers<[1], [0], [0], [1], [0, 0, 1, 1], [], []>} : vector<8x128xf32>, vector<128x256xf32>, vector<8x256xf32> -> vector<8x256xf32>
    %c2_23 = arith.constant 2 : index
    %c0_24 = arith.constant 0 : index
    %39 = vector.load %arg11[%c2_23, %c0_24] : memref<8x256xf32, #tpu.memory_space<vmem>>, vector<1x256xf32>
    %40 = vector.broadcast %39 : vector<1x256xf32> to vector<8x256xf32>
    %41 = arith.addf %38, %40 : vector<8x256xf32>
    %42 = arith.negf %41 : vector<8x256xf32>
    %43 = math.exp %42 : vector<8x256xf32>
    %cst_25 = arith.constant 1.000000e+00 : f32
    %44 = vector.broadcast %cst_25 : f32 to vector<8x256xf32>
    %45 = arith.addf %44, %43 : vector<8x256xf32>
    %46 = arith.divf %44, %45 : vector<8x256xf32>
    %47 = arith.mulf %41, %46 : vector<8x256xf32>
    %48 = arith.addf %47, %22 : vector<8x256xf32>
    %c0_26 = arith.constant 0 : index
    %c0_27 = arith.constant 0 : index
    %49 = vector.load %arg8[%c0_26, %c0_27] : memref<256x256xf32, #tpu.memory_space<vmem>>, vector<256x256xf32>
    %cst_28 = arith.constant dense<0.000000e+00> : vector<8x256xf32>
    %50 = tpu.matmul %48, %49, %cst_28 {dimension_numbers = #tpu.dot_dimension_numbers<[1], [0], [0], [1], [0, 0, 1, 1], [], []>} : vector<8x256xf32>, vector<256x256xf32>, vector<8x256xf32> -> vector<8x256xf32>
    %c0_29 = arith.constant 0 : index
    %c0_30 = arith.constant 0 : index
    %51 = vector.load %arg9[%c0_29, %c0_30] : memref<256x128xf32, #tpu.memory_space<vmem>>, vector<256x128xf32>
    %cst_31 = arith.constant dense<0.000000e+00> : vector<8x128xf32>
    %52 = tpu.matmul %35, %51, %cst_31 {dimension_numbers = #tpu.dot_dimension_numbers<[1], [0], [0], [1], [0, 0, 1, 1], [], []>} : vector<8x256xf32>, vector<256x128xf32>, vector<8x128xf32> -> vector<8x128xf32>
    %53 = vector.extract_strided_slice %50 {offsets = [0, 0], sizes = [8, 128], strides = [1, 1]} : vector<8x256xf32> to vector<8x128xf32>
    %54 = vector.extract_strided_slice %50 {offsets = [0, 128], sizes = [8, 128], strides = [1, 1]} : vector<8x256xf32> to vector<8x128xf32>
    %cst_32 = arith.constant 0.000000e+00 : f32
    %55 = vector.broadcast %cst_32 : f32 to vector<1x128xf32>
    %c0_33 = arith.constant 0 : index
    %c0_34 = arith.constant 0 : index
    %56 = vector.load %arg13[%c0_33, %c0_34] : memref<16x128xf32, #tpu.memory_space<vmem>>, vector<1x128xf32>
    tpu.vector_store %arg13[%c0_33, %c0_34], %55 {strides = array<i32>} : memref<16x128xf32, #tpu.memory_space<vmem>>, vector<1x128xf32>,
    %c1_35 = arith.constant 1 : index
    %c0_36 = arith.constant 0 : index
    %57 = vector.load %arg13[%c1_35, %c0_36] : memref<16x128xf32, #tpu.memory_space<vmem>>, vector<8x128xf32>
    tpu.vector_store %arg13[%c1_35, %c0_36], %53 {strides = array<i32>} : memref<16x128xf32, #tpu.memory_space<vmem>>, vector<8x128xf32>,
    %c0_37 = arith.constant 0 : index
    %c0_38 = arith.constant 0 : index
    %58 = vector.load %arg13[%c0_37, %c0_38] : memref<16x128xf32, #tpu.memory_space<vmem>>, vector<8x128xf32>
    %59 = arith.addf %58, %52 : vector<8x128xf32>
    %60 = arith.addf %59, %54 : vector<8x128xf32>
    %c3 = arith.constant 3 : index
    %c0_39 = arith.constant 0 : index
    %61 = vector.load %arg11[%c3, %c0_39] : memref<8x256xf32, #tpu.memory_space<vmem>>, vector<1x128xf32>
    %62 = vector.broadcast %61 : vector<1x128xf32> to vector<8x128xf32>
    %63 = arith.addf %60, %62 : vector<8x128xf32>
    %64 = arith.negf %63 : vector<8x128xf32>
    %65 = math.exp %64 : vector<8x128xf32>
    %cst_40 = arith.constant 1.000000e+00 : f32
    %66 = vector.broadcast %cst_40 : f32 to vector<8x128xf32>
    %67 = arith.addf %66, %65 : vector<8x128xf32>
    %68 = arith.divf %66, %67 : vector<8x128xf32>
    %69 = arith.mulf %63, %68 : vector<8x128xf32>
    %c0_41 = arith.constant 0 : index
    %c0_42 = arith.constant 0 : index
    %70 = vector.load %arg4[%c0_41, %c0_42] : memref<4x128xf32, #tpu.memory_space<vmem>>, vector<4x128xf32>
    %c0_43 = arith.constant 0 : index
    %c0_44 = arith.constant 0 : index
    %71 = vector.load %arg10[%c0_43, %c0_44] : memref<128x128xf32, #tpu.memory_space<vmem>>, vector<128x128xf32>
    %cst_45 = arith.constant dense<0.000000e+00> : vector<4x128xf32>
    %72 = tpu.matmul %70, %71, %cst_45 {dimension_numbers = #tpu.dot_dimension_numbers<[1], [0], [0], [1], [0, 0, 1, 1], [], []>} : vector<4x128xf32>, vector<128x128xf32>, vector<4x128xf32> -> vector<4x128xf32>
    %c4 = arith.constant 4 : index
    %c0_46 = arith.constant 0 : index
    %73 = vector.load %arg11[%c4, %c0_46] : memref<8x256xf32, #tpu.memory_space<vmem>>, vector<1x128xf32>
    %74 = vector.broadcast %73 : vector<1x128xf32> to vector<4x128xf32>
    %75 = arith.addf %72, %74 : vector<4x128xf32>
    %76 = arith.negf %75 : vector<4x128xf32>
    %77 = math.exp %76 : vector<4x128xf32>
    %cst_47 = arith.constant 1.000000e+00 : f32
    %78 = vector.broadcast %cst_47 : f32 to vector<4x128xf32>
    %79 = arith.addf %78, %77 : vector<4x128xf32>
    %80 = arith.divf %78, %79 : vector<4x128xf32>
    %81 = arith.mulf %75, %80 : vector<4x128xf32>
    %82 = arith.addf %69, %11 : vector<8x128xf32>
    %83 = vector.extract_strided_slice %82 {offsets = [0, 0], sizes = [2, 128], strides = [1, 1]} : vector<8x128xf32> to vector<2x128xf32>
    %84 = vector.extract_strided_slice %81 {offsets = [0, 0], sizes = [1, 128], strides = [1, 1]} : vector<4x128xf32> to vector<1x128xf32>
    %85 = vector.broadcast %84 : vector<1x128xf32> to vector<2x128xf32>
    %86 = arith.addf %83, %85 : vector<2x128xf32>
    %c0_48 = arith.constant 0 : index
    %c0_49 = arith.constant 0 : index
    %87 = vector.load %arg12[%c0_48, %c0_49] : memref<8x128xf32, #tpu.memory_space<vmem>>, vector<2x128xf32>
    tpu.vector_store %arg12[%c0_48, %c0_49], %86 {strides = array<i32>} : memref<8x128xf32, #tpu.memory_space<vmem>>, vector<2x128xf32>,
    %88 = vector.extract_strided_slice %82 {offsets = [2, 0], sizes = [2, 128], strides = [1, 1]} : vector<8x128xf32> to vector<2x128xf32>
    %89 = vector.extract_strided_slice %81 {offsets = [1, 0], sizes = [1, 128], strides = [1, 1]} : vector<4x128xf32> to vector<1x128xf32>
    %90 = vector.broadcast %89 : vector<1x128xf32> to vector<2x128xf32>
    %91 = arith.addf %88, %90 : vector<2x128xf32>
    %c2_50 = arith.constant 2 : index
    %c0_51 = arith.constant 0 : index
    %92 = vector.load %arg12[%c2_50, %c0_51] : memref<8x128xf32, #tpu.memory_space<vmem>>, vector<2x128xf32>
    tpu.vector_store %arg12[%c2_50, %c0_51], %91 {strides = array<i32>} : memref<8x128xf32, #tpu.memory_space<vmem>>, vector<2x128xf32>,
    %93 = vector.extract_strided_slice %82 {offsets = [4, 0], sizes = [2, 128], strides = [1, 1]} : vector<8x128xf32> to vector<2x128xf32>
    %94 = vector.extract_strided_slice %81 {offsets = [2, 0], sizes = [1, 128], strides = [1, 1]} : vector<4x128xf32> to vector<1x128xf32>
    %95 = vector.broadcast %94 : vector<1x128xf32> to vector<2x128xf32>
    %96 = arith.addf %93, %95 : vector<2x128xf32>
    %c4_52 = arith.constant 4 : index
    %c0_53 = arith.constant 0 : index
    %97 = vector.load %arg12[%c4_52, %c0_53] : memref<8x128xf32, #tpu.memory_space<vmem>>, vector<2x128xf32>
    tpu.vector_store %arg12[%c4_52, %c0_53], %96 {strides = array<i32>} : memref<8x128xf32, #tpu.memory_space<vmem>>, vector<2x128xf32>,
    %98 = vector.extract_strided_slice %82 {offsets = [6, 0], sizes = [2, 128], strides = [1, 1]} : vector<8x128xf32> to vector<2x128xf32>
    %99 = vector.extract_strided_slice %81 {offsets = [3, 0], sizes = [1, 128], strides = [1, 1]} : vector<4x128xf32> to vector<1x128xf32>
    %100 = vector.broadcast %99 : vector<1x128xf32> to vector<2x128xf32>
    %101 = arith.addf %98, %100 : vector<2x128xf32>
    %c6 = arith.constant 6 : index
    %c0_54 = arith.constant 0 : index
    %102 = vector.load %arg12[%c6, %c0_54] : memref<8x128xf32, #tpu.memory_space<vmem>>, vector<2x128xf32>
    tpu.vector_store %arg12[%c6, %c0_54], %101 {strides = array<i32>} : memref<8x128xf32, #tpu.memory_space<vmem>>, vector<2x128xf32>,
    return
  }
  func.func @transform_0(%arg0: i32) -> (i32, i32) {
    %c0_i32 = arith.constant 0 : i32
    %c0_i32_0 = arith.constant 0 : i32
    %c0_i32_1 = arith.constant 0 : i32
    return %c0_i32, %c0_i32_0 : i32, i32
  }
  func.func @transform_1(%arg0: i32) -> (i32, i32) {
    %c0_i32 = arith.constant 0 : i32
    %c0_i32_0 = arith.constant 0 : i32
    %c0_i32_1 = arith.constant 0 : i32
    return %c0_i32, %c0_i32_0 : i32, i32
  }
  func.func @transform_2(%arg0: i32) -> (i32, i32) {
    %c0_i32 = arith.constant 0 : i32
    %c0_i32_0 = arith.constant 0 : i32
    %c0_i32_1 = arith.constant 0 : i32
    return %c0_i32, %c0_i32_0 : i32, i32
  }
  func.func @transform_3(%arg0: i32) -> (i32, i32) {
    %c0_i32 = arith.constant 0 : i32
    %c0_i32_0 = arith.constant 0 : i32
    %c0_i32_1 = arith.constant 0 : i32
    return %c0_i32, %c0_i32_0 : i32, i32
  }
  func.func @transform_4(%arg0: i32) -> (i32, i32) {
    %c0_i32 = arith.constant 0 : i32
    %c0_i32_0 = arith.constant 0 : i32
    %c0_i32_1 = arith.constant 0 : i32
    return %c0_i32, %c0_i32_0 : i32, i32
  }
  func.func @transform_5(%arg0: i32) -> (i32, i32) {
    %c0_i32 = arith.constant 0 : i32
    %c0_i32_0 = arith.constant 0 : i32
    %c0_i32_1 = arith.constant 0 : i32
    return %c0_i32, %c0_i32_0 : i32, i32
  }
  func.func @transform_6(%arg0: i32) -> (i32, i32) {
    %c0_i32 = arith.constant 0 : i32
    %c0_i32_0 = arith.constant 0 : i32
    %c0_i32_1 = arith.constant 0 : i32
    return %c0_i32, %c0_i32_0 : i32, i32
  }
  func.func @transform_7(%arg0: i32) -> (i32, i32) {
    %c0_i32 = arith.constant 0 : i32
    %c0_i32_0 = arith.constant 0 : i32
    %c0_i32_1 = arith.constant 0 : i32
    return %c0_i32, %c0_i32_0 : i32, i32
  }
  func.func @transform_8(%arg0: i32) -> (i32, i32) {
    %c0_i32 = arith.constant 0 : i32
    %c0_i32_0 = arith.constant 0 : i32
    %c0_i32_1 = arith.constant 0 : i32
    return %c0_i32, %c0_i32_0 : i32, i32
  }
  func.func @transform_9(%arg0: i32) -> (i32, i32) {
    %c0_i32 = arith.constant 0 : i32
    %c0_i32_0 = arith.constant 0 : i32
    %c0_i32_1 = arith.constant 0 : i32
    return %c0_i32, %c0_i32_0 : i32, i32
  }
  func.func @transform_10(%arg0: i32) -> (i32, i32) {
    %c0_i32 = arith.constant 0 : i32
    %c0_i32_0 = arith.constant 0 : i32
    %c0_i32_1 = arith.constant 0 : i32
    return %c0_i32, %c0_i32_0 : i32, i32
  }
  func.func @transform_11(%arg0: i32) -> (i32, i32) {
    %c0_i32 = arith.constant 0 : i32
    %c0_i32_0 = arith.constant 0 : i32
    %c0_i32_1 = arith.constant 0 : i32
    return %c0_i32, %c0_i32_0 : i32, i32
  }
}

</mosaic_0001>

<llo_original>
// kernel: dpe_forward.1
$region0: #{dpe_forward.1}
  #allocation0 [shape = 'u32[]', space=smem, size = 0x4, offset = 0x4, fixed_abs, tag = 'smem constant byte address 0x4 - core index']
  #allocation1 [shape = 'u32[72,128]{1,0:T(1,128)}', space=vmem, size = 0x9000, scoped, tag = 'internal scratch']
  #allocation2 [shape = 'f32[16,128]{1,0:T(8,128)}', space=vmem, size = 0x2000, scoped, tag = 'scratch operand']
  %s0 = inlined_call_operand.vmem [shape: f32[8,128], index: 0, kind: input, shape index: {}]
  %s1 = inlined_call_operand.vmem [shape: f32[8,128], index: 1, kind: input, shape index: {}]
  %s2 = inlined_call_operand.vmem [shape: f32[8,128], index: 2, kind: input, shape index: {}]
  %s3 = inlined_call_operand.vmem [shape: f32[4,128], index: 3, kind: input, shape index: {}]
  %s4 = inlined_call_operand.vmem [shape: f32[128,128], index: 4, kind: input, shape index: {}]
  %s5 = inlined_call_operand.vmem [shape: f32[128,256], index: 5, kind: input, shape index: {}]
  %s6 = inlined_call_operand.vmem [shape: f32[128,256], index: 6, kind: input, shape index: {}]
  %s7 = inlined_call_operand.hbm [shape: f32[256,256], index: 7, kind: input, shape index: {}]
  %s8 = inlined_call_operand.hbm [shape: f32[256,128], index: 8, kind: input, shape index: {}]
  %s9 = inlined_call_operand.vmem [shape: f32[128,128], index: 9, kind: input, shape index: {}]
  %s10 = inlined_call_operand.vmem [shape: f32[8,256], index: 10, kind: input, shape index: {}]
  %s11 = inlined_call_operand.vmem [shape: f32[8,128], index: 11, kind: output, shape index: {}]
  %s12 = sld [smem:[#allocation0]]
  $region62: #{dpe_forward.1} parent=0
    _
  %s14 = ssub.s32 1, %s12
  %s15 = scalar_select 0, %s14, %s12
  $region1: #{dpe_forward.1} parent=0
    #allocation3 [shape = 'u8[262144]{0}', space=vmem, size = 0x40000, scoped, tag = 'input window, operand 7, single buffered']
    #allocation4 [shape = 's32[1]{0}', space=sflag, size = 0x4, scoped, tag = 'scoped memory for dpe_forward.1']
    #allocation5 [shape = 'u8[131072]{0}', space=vmem, size = 0x20000, scoped, tag = 'input window, operand 8, single buffered']
    #allocation6 [shape = 's32[1]{0}', space=sflag, size = 0x4, scoped, tag = 'scoped memory for dpe_forward.1']
    %16 = vsyncpa [#allocation4], 0
    %17 = vsyncpa [#allocation6], 0
    // Predicated region
    $region2: #{dpe_forward.1} parent=1 // pred_check
      _
    $region3: #{dpe_forward.1} parent=1 // pred_check_branch
      %19 = sbr.rel (0) target = $region5
    $region4: #{dpe_forward.1} parent=1 // pred_region
      _
    $region5: #{dpe_forward.1} parent=1 // pred_fallthru
      _
    // Predicated region
    $region6: #{dpe_forward.1} parent=1 // pred_check
      _
    $region7: #{dpe_forward.1} parent=1 // pred_check_branch
      %21 = sbr.rel (0) target = $region9
    $region8: #{dpe_forward.1} parent=1 // pred_region
      _
    $region9: #{dpe_forward.1} parent=1 // pred_fallthru
      _
    // Predicated region
    $region10: #{dpe_forward.1} parent=1 // pred_check
      _
    $region11: #{dpe_forward.1} parent=1 // pred_check_branch
      %23 = sbr.rel (0) target = $region13
    $region12: #{dpe_forward.1} parent=1 // pred_region
      _
    $region13: #{dpe_forward.1} parent=1 // pred_fallthru
      _
    // Predicated region
    $region14: #{dpe_forward.1} parent=1 // pred_check
      _
    $region15: #{dpe_forward.1} parent=1 // pred_check_branch
      %25 = sbr.rel (0) target = $region17
    $region16: #{dpe_forward.1} parent=1 // pred_region
      _
    $region17: #{dpe_forward.1} parent=1 // pred_fallthru
      _
    // Predicated region
    $region18: #{dpe_forward.1} parent=1 // pred_check
      _
    $region19: #{dpe_forward.1} parent=1 // pred_check_branch
      %27 = sbr.rel (0) target = $region21
    $region20: #{dpe_forward.1} parent=1 // pred_region
      _
    $region21: #{dpe_forward.1} parent=1 // pred_fallthru
      _
    // Predicated region
    $region22: #{dpe_forward.1} parent=1 // pred_check
      _
    $region23: #{dpe_forward.1} parent=1 // pred_check_branch
      %29 = sbr.rel (0) target = $region25
    $region24: #{dpe_forward.1} parent=1 // pred_region
      _
    $region25: #{dpe_forward.1} parent=1 // pred_fallthru
      _
    // Predicated region
    $region26: #{dpe_forward.1} parent=1 // pred_check
      _
    $region27: #{dpe_forward.1} parent=1 // pred_check_branch
      %31 = sbr.rel (0) target = $region29
    $region28: #{dpe_forward.1} parent=1 // pred_region
      _
    $region29: #{dpe_forward.1} parent=1 // pred_fallthru
      _
    // Predicated region
    $region30: #{dpe_forward.1} parent=1 // pred_check
      _
    $region31: #{dpe_forward.1} parent=1 // pred_check_branch
      %33 = sbr.rel (0) target = $region33
    $region32: #{dpe_forward.1} parent=1 // pred_region
      %35 = vsyncadd [#allocation4], 0
      %s36 = sshll.u32 %s7, 4
      %s37 = int_to_ptr.hbm [resolvable:$true] %s36
      %s38 = sshll.u32 [#allocation3], 4
      %s39 = int_to_ptr.vmem [resolvable:$true] %s38
      %44 = dma.hbm_to_vmem [thread:$0]  %s37, 8192, %s39, [#allocation4], 256, 256, 16
    $region33: #{dpe_forward.1} parent=1 // pred_fallthru
      _
    // Predicated region
    $region34: #{dpe_forward.1} parent=1 // pred_check
      _
    $region35: #{dpe_forward.1} parent=1 // pred_check_branch
      %46 = sbr.rel (0) target = $region37
    $region36: #{dpe_forward.1} parent=1 // pred_region
      %48 = vsyncadd [#allocation6], 0
      %s49 = sshll.u32 %s8, 4
      %s50 = int_to_ptr.hbm [resolvable:$true] %s49
      %s51 = sshll.u32 [#allocation5], 4
      %s52 = int_to_ptr.vmem [resolvable:$true] %s51
      %57 = dma.hbm_to_vmem [thread:$0]  %s50, 4096, %s52, [#allocation6], 128, 128, 8
    $region37: #{dpe_forward.1} parent=1 // pred_fallthru
      _
    // Predicated region
    $region38: #{dpe_forward.1} parent=1 // pred_check
      _
    $region39: #{dpe_forward.1} parent=1 // pred_check_branch
      %59 = sbr.rel (0) target = $region41
    $region40: #{dpe_forward.1} parent=1 // pred_region
      _
    $region41: #{dpe_forward.1} parent=1 // pred_fallthru
      _
    // Predicated region
    $region42: #{dpe_forward.1} parent=1 // pred_check
      _
    $region43: #{dpe_forward.1} parent=1 // pred_check_branch
      %61 = sbr.rel (0) target = $region45
    $region44: #{dpe_forward.1} parent=1 // pred_region
      _
    $region45: #{dpe_forward.1} parent=1 // pred_fallthru
      _
    // Predicated region
    $region46: #{dpe_forward.1} parent=1 // pred_check
      _
    $region47: #{dpe_forward.1} parent=1 // pred_check_branch
      %63 = sbr.rel (0) target = $region49
    $region48: #{dpe_forward.1} parent=1 // pred_region
      %65 = dma.done [#allocation4], 8192
    $region49: #{dpe_forward.1} parent=1 // pred_fallthru
      _
    // Predicated region
    $region50: #{dpe_forward.1} parent=1 // pred_check
      _
    $region51: #{dpe_forward.1} parent=1 // pred_check_branch
      %67 = sbr.rel (0) target = $region53
    $region52: #{dpe_forward.1} parent=1 // pred_region
      %69 = dma.done [#allocation6], 4096
    $region53: #{dpe_forward.1} parent=1 // pred_fallthru
      _
    %v70 = vld [vmem:[%s2] sm:$0xff]
    %v71 = vld [vmem:[%s4] sm:$0xff]
    %v72 = vld [vmem:[%s4 + $0x8] sm:$0xff]
    %v73 = vld [vmem:[%s4 + $0x10] sm:$0xff]
    %v74 = vld [vmem:[%s4 + $0x18] sm:$0xff]
    %v75 = vld [vmem:[%s4 + $0x20] sm:$0xff]
    %v76 = vld [vmem:[%s4 + $0x28] sm:$0xff]
    %v77 = vld [vmem:[%s4 + $0x30] sm:$0xff]
    %v78 = vld [vmem:[%s4 + $0x38] sm:$0xff]
    %v79 = vld [vmem:[%s4 + $0x40] sm:$0xff]
    %v80 = vld [vmem:[%s4 + $0x48] sm:$0xff]
    %v81 = vld [vmem:[%s4 + $0x50] sm:$0xff]
    %v82 = vld [vmem:[%s4 + $0x58] sm:$0xff]
    %v83 = vld [vmem:[%s4 + $0x60] sm:$0xff]
    %v84 = vld [vmem:[%s4 + $0x68] sm:$0xff]
    %v85 = vld [vmem:[%s4 + $0x70] sm:$0xff]
    %v86 = vld [vmem:[%s4 + $0x78] sm:$0xff]
    %v87 = vld [vmem:[%s10] ss:$0 sm:$0xff]
    %88 = vmatpush.msra.mxu0 %v86
    %89 = vmatpush.msra.mxu0 %v85
    %90 = vmatpush.msra.mxu0 %v84
    %91 = vmatpush.msra.mxu0 %v83
    %92 = vmatpush.msra.mxu0 %v82
    %93 = vmatpush.msra.mxu0 %v81
    %94 = vmatpush.msra.mxu0 %v80
    %95 = vmatpush.msra.mxu0 %v79
    %96 = vmatpush.msra.mxu0 %v78
    %97 = vmatpush.msra.mxu0 %v77
    %98 = vmatpush.msra.mxu0 %v76
    %99 = vmatpush.msra.mxu0 %v75
    %100 = vmatpush.msra.mxu0 %v74
    %101 = vmatpush.msra.mxu0 %v73
    %102 = vmatpush.msra.mxu0 %v72
    %103 = vmatpush.msra.mxu0 %v71
    %104 = vmatmul.f32.gmra.mxu0 %v70
    %v105 = vpop.f32.mrf.mxu0
    %v106 = vadd.f32 %v87, %v105
    %107 = vdwg.mxu0
    %v108 = vxor.u32 %v106, 2147483648
    %v109 = vmul.f32 %v108, 1.442695
    %v110 = vpow.pop %v109
    %v111 = vadd.f32 %v110, 1.0
    %v112 = vrcp.pop %v111
    %v113 = vmul.f32 %v111, %v112
    %v114 = vsub.f32 1.0, %v113
    %v115 = vmul.f32 %v112, %v114
    %v116 = vadd.f32 %v112, %v115
    %vm117 = vweird.f32 %v111
    %vm118 = vweird.f32 %v112
    %vm119 = vmor %vm117, %vm118
    %v120 = vsel %vm119, %v112, %v116
    %v121 = vand.u32 2147483647, %v111
    %vm122 = vcmp.eq.f32.partialorder %v121, 8.507059e+37
    %v123 = vand.u32 %v111, 2147483648
    %v124 = vor.u32 1.1754944e-38, %v123
    %v125 = vsel %vm122, %v124, %v120
    %v126 = vmul.f32 1.0, %v125
    %v127 = vmul.f32 %v106, %v126
    %v128 = vld [vmem:[%s5] sm:$0xff]
    %v129 = vld [vmem:[%s5 + $0x8] sm:$0xff]
    %v130 = vld [vmem:[%s5 + $0x10] sm:$0xff]
    %v131 = vld [vmem:[%s5 + $0x18] sm:$0xff]
    %v132 = vld [vmem:[%s5 + $0x20] sm:$0xff]
    %v133 = vld [vmem:[%s5 + $0x28] sm:$0xff]
    %v134 = vld [vmem:[%s5 + $0x30] sm:$0xff]
    %v135 = vld [vmem:[%s5 + $0x38] sm:$0xff]
    %v136 = vld [vmem:[%s5 + $0x40] sm:$0xff]
    %v137 = vld [vmem:[%s5 + $0x48] sm:$0xff]
    %v138 = vld [vmem:[%s5 + $0x50] sm:$0xff]
    %v139 = vld [vmem:[%s5 + $0x58] sm:$0xff]
    %v140 = vld [vmem:[%s5 + $0x60] sm:$0xff]
    %v141 = vld [vmem:[%s5 + $0x68] sm:$0xff]
    %v142 = vld [vmem:[%s5 + $0x70] sm:$0xff]
    %v143 = vld [vmem:[%s5 + $0x78] sm:$0xff]
    %v144 = vld [vmem:[%s5 + $0x80] sm:$0xff]
    %v145 = vld [vmem:[%s5 + $0x88] sm:$0xff]
    %v146 = vld [vmem:[%s5 + $0x90] sm:$0xff]
    %v147 = vld [vmem:[%s5 + $0x98] sm:$0xff]
    %v148 = vld [vmem:[%s5 + $0xa0] sm:$0xff]
    %v149 = vld [vmem:[%s5 + $0xa8] sm:$0xff]
    %v150 = vld [vmem:[%s5 + $0xb0] sm:$0xff]
    %v151 = vld [vmem:[%s5 + $0xb8] sm:$0xff]
    %v152 = vld [vmem:[%s5 + $0xc0] sm:$0xff]
    %v153 = vld [vmem:[%s5 + $0xc8] sm:$0xff]
    %v154 = vld [vmem:[%s5 + $0xd0] sm:$0xff]
    %v155 = vld [vmem:[%s5 + $0xd8] sm:$0xff]
    %v156 = vld [vmem:[%s5 + $0xe0] sm:$0xff]
    %v157 = vld [vmem:[%s5 + $0xe8] sm:$0xff]
    %v158 = vld [vmem:[%s5 + $0xf0] sm:$0xff]
    %v159 = vld [vmem:[%s5 + $0xf8] sm:$0xff]
    %s160 = scalar_lea.vmem %s10, 1
    %v161 = vld [vmem:[%s160] ss:$8 sm:$0x3]
    %v163 = vperm.slane %v161, 0
    %v164 = vperm.slane %v161, 1
    %167 = vmatpush.msra.mxu0 %v158
    %168 = vmatpush.msra.mxu0 %v156
    %169 = vmatpush.msra.mxu0 %v154
    %170 = vmatpush.msra.mxu0 %v152
    %171 = vmatpush.msra.mxu0 %v150
    %172 = vmatpush.msra.mxu0 %v148
    %173 = vmatpush.msra.mxu0 %v146
    %174 = vmatpush.msra.mxu0 %v144
    %175 = vmatpush.msra.mxu0 %v142
    %176 = vmatpush.msra.mxu0 %v140
    %177 = vmatpush.msra.mxu0 %v138
    %178 = vmatpush.msra.mxu0 %v136
    %179 = vmatpush.msra.mxu0 %v134
    %180 = vmatpush.msra.mxu0 %v132
    %181 = vmatpush.msra.mxu0 %v130
    %182 = vmatpush.msra.mxu0 %v128
    %183 = vmatmul.f32.gmra.mxu0 %v127
    %v184 = vpop.f32.mrf.mxu0
    %v185 = vadd.f32 %v163, %v184
    %186 = vdwg.mxu0
    %187 = vmatpush.msra.mxu0 %v159
    %188 = vmatpush.msra.mxu0 %v157
    %189 = vmatpush.msra.mxu0 %v155
    %190 = vmatpush.msra.mxu0 %v153
    %191 = vmatpush.msra.mxu0 %v151
    %192 = vmatpush.msra.mxu0 %v149
    %193 = vmatpush.msra.mxu0 %v147
    %194 = vmatpush.msra.mxu0 %v145
    %195 = vmatpush.msra.mxu0 %v143
    %196 = vmatpush.msra.mxu0 %v141
    %197 = vmatpush.msra.mxu0 %v139
    %198 = vmatpush.msra.mxu0 %v137
    %199 = vmatpush.msra.mxu0 %v135
    %200 = vmatpush.msra.mxu0 %v133
    %201 = vmatpush.msra.mxu0 %v131
    %202 = vmatpush.msra.mxu0 %v129
    %203 = vmatmul.f32.gmra.mxu0 %v127
    %v204 = vpop.f32.mrf.mxu0
    %v205 = vadd.f32 %v164, %v204
    %206 = vdwg.mxu0
    %v207 = vxor.u32 %v185, 2147483648
    %v208 = vxor.u32 %v205, 2147483648
    %v209 = vmul.f32 %v207, 1.442695
    %v210 = vpow.pop %v209
    %v211 = vmul.f32 %v208, 1.442695
    %v212 = vpow.pop %v211
    %v213 = vadd.f32 %v210, 1.0
    %v214 = vadd.f32 %v212, 1.0
    %v215 = vrcp.pop %v213
    %v216 = vmul.f32 %v213, %v215
    %v217 = vsub.f32 1.0, %v216
    %v218 = vmul.f32 %v215, %v217
    %v219 = vadd.f32 %v215, %v218
    %vm220 = vweird.f32 %v213
    %vm221 = vweird.f32 %v215
    %vm222 = vmor %vm220, %vm221
    %v223 = vsel %vm222, %v215, %v219
    %v224 = vand.u32 2147483647, %v213
    %vm225 = vcmp.eq.f32.partialorder %v224, 8.507059e+37
    %v226 = vand.u32 %v213, 2147483648
    %v227 = vor.u32 1.1754944e-38, %v226
    %v228 = vsel %vm225, %v227, %v223
    %v229 = vmul.f32 1.0, %v228
    %v230 = vrcp.pop %v214
    %v231 = vmul.f32 %v214, %v230
    %v232 = vsub.f32 1.0, %v231
    %v233 = vmul.f32 %v230, %v232
    %v234 = vadd.f32 %v230, %v233
    %vm235 = vweird.f32 %v214
    %vm236 = vweird.f32 %v230
    %vm237 = vmor %vm235, %vm236
    %v238 = vsel %vm237, %v230, %v234
    %v239 = vand.u32 2147483647, %v214
    %vm240 = vcmp.eq.f32.partialorder %v239, 8.507059e+37
    %v241 = vand.u32 %v214, 2147483648
    %v242 = vor.u32 1.1754944e-38, %v241
    %v243 = vsel %vm240, %v242, %v238
    %v244 = vmul.f32 1.0, %v243
    %v245 = vmul.f32 %v185, %v229
    %v246 = vmul.f32 %v205, %v244
    %v247 = vld [vmem:[%s0] sm:$0xff]
    %v248 = vld [vmem:[%s6] sm:$0xff]
    %v249 = vld [vmem:[%s6 + $0x8] sm:$0xff]
    %v250 = vld [vmem:[%s6 + $0x10] sm:$0xff]
    %v251 = vld [vmem:[%s6 + $0x18] sm:$0xff]
    %v252 = vld [vmem:[%s6 + $0x20] sm:$0xff]
    %v253 = vld [vmem:[%s6 + $0x28] sm:$0xff]
    %v254 = vld [vmem:[%s6 + $0x30] sm:$0xff]
    %v255 = vld [vmem:[%s6 + $0x38] sm:$0xff]
    %v256 = vld [vmem:[%s6 + $0x40] sm:$0xff]
    %v257 = vld [vmem:[%s6 + $0x48] sm:$0xff]
    %v258 = vld [vmem:[%s6 + $0x50] sm:$0xff]
    %v259 = vld [vmem:[%s6 + $0x58] sm:$0xff]
    %v260 = vld [vmem:[%s6 + $0x60] sm:$0xff]
    %v261 = vld [vmem:[%s6 + $0x68] sm:$0xff]
    %v262 = vld [vmem:[%s6 + $0x70] sm:$0xff]
    %v263 = vld [vmem:[%s6 + $0x78] sm:$0xff]
    %v264 = vld [vmem:[%s6 + $0x80] sm:$0xff]
    %v265 = vld [vmem:[%s6 + $0x88] sm:$0xff]
    %v266 = vld [vmem:[%s6 + $0x90] sm:$0xff]
    %v267 = vld [vmem:[%s6 + $0x98] sm:$0xff]
    %v268 = vld [vmem:[%s6 + $0xa0] sm:$0xff]
    %v269 = vld [vmem:[%s6 + $0xa8] sm:$0xff]
    %v270 = vld [vmem:[%s6 + $0xb0] sm:$0xff]
    %v271 = vld [vmem:[%s6 + $0xb8] sm:$0xff]
    %v272 = vld [vmem:[%s6 + $0xc0] sm:$0xff]
    %v273 = vld [vmem:[%s6 + $0xc8] sm:$0xff]
    %v274 = vld [vmem:[%s6 + $0xd0] sm:$0xff]
    %v275 = vld [vmem:[%s6 + $0xd8] sm:$0xff]
    %v276 = vld [vmem:[%s6 + $0xe0] sm:$0xff]
    %v277 = vld [vmem:[%s6 + $0xe8] sm:$0xff]
    %v278 = vld [vmem:[%s6 + $0xf0] sm:$0xff]
    %v279 = vld [vmem:[%s6 + $0xf8] sm:$0xff]
    %s280 = scalar_lea.vmem %s10, 2
    %v281 = vld [vmem:[%s280] ss:$8 sm:$0x3]
    %v283 = vperm.slane %v281, 0
    %v284 = vperm.slane %v281, 1
    %287 = vmatpush.msra.mxu0 %v278
    %288 = vmatpush.msra.mxu0 %v276
    %289 = vmatpush.msra.mxu0 %v274
    %290 = vmatpush.msra.mxu0 %v272
    %291 = vmatpush.msra.mxu0 %v270
    %292 = vmatpush.msra.mxu0 %v268
    %293 = vmatpush.msra.mxu0 %v266
    %294 = vmatpush.msra.mxu0 %v264
    %295 = vmatpush.msra.mxu0 %v262
    %296 = vmatpush.msra.mxu0 %v260
    %297 = vmatpush.msra.mxu0 %v258
    %298 = vmatpush.msra.mxu0 %v256
    %299 = vmatpush.msra.mxu0 %v254
    %300 = vmatpush.msra.mxu0 %v252
    %301 = vmatpush.msra.mxu0 %v250
    %302 = vmatpush.msra.mxu0 %v248
    %303 = vmatmul.f32.gmra.mxu0 %v247
    %v304 = vpop.f32.mrf.mxu0
    %v305 = vadd.f32 %v283, %v304
    %306 = vdwg.mxu0
    %307 = vmatpush.msra.mxu0 %v279
    %308 = vmatpush.msra.mxu0 %v277
    %309 = vmatpush.msra.mxu0 %v275
    %310 = vmatpush.msra.mxu0 %v273
    %311 = vmatpush.msra.mxu0 %v271
    %312 = vmatpush.msra.mxu0 %v269
    %313 = vmatpush.msra.mxu0 %v267
    %314 = vmatpush.msra.mxu0 %v265
    %315 = vmatpush.msra.mxu0 %v263
    %316 = vmatpush.msra.mxu0 %v261
    %317 = vmatpush.msra.mxu0 %v259
    %318 = vmatpush.msra.mxu0 %v257
    %319 = vmatpush.msra.mxu0 %v255
    %320 = vmatpush.msra.mxu0 %v253
    %321 = vmatpush.msra.mxu0 %v251
    %322 = vmatpush.msra.mxu0 %v249
    %323 = vmatmul.f32.gmra.mxu0 %v247
    %v324 = vpop.f32.mrf.mxu0
    %v325 = vadd.f32 %v284, %v324
    %326 = vdwg.mxu0
    %v327 = vxor.u32 %v305, 2147483648
    %v328 = vxor.u32 %v325, 2147483648
    %v329 = vmul.f32 %v327, 1.442695
    %v330 = vpow.pop %v329
    %v331 = vmul.f32 %v328, 1.442695
    %v332 = vpow.pop %v331
    %v333 = vadd.f32 %v330, 1.0
    %v334 = vadd.f32 %v332, 1.0
    %v335 = vrcp.pop %v333
    %v336 = vmul.f32 %v333, %v335
    %v337 = vsub.f32 1.0, %v336
    %v338 = vmul.f32 %v335, %v337
    %v339 = vadd.f32 %v335, %v338
    %vm340 = vweird.f32 %v333
    %vm341 = vweird.f32 %v335
    %vm342 = vmor %vm340, %vm341
    %v343 = vsel %vm342, %v335, %v339
    %v344 = vand.u32 2147483647, %v333
    %vm345 = vcmp.eq.f32.partialorder %v344, 8.507059e+37
    %v346 = vand.u32 %v333, 2147483648
    %v347 = vor.u32 1.1754944e-38, %v346
    %v348 = vsel %vm345, %v347, %v343
    %v349 = vmul.f32 1.0, %v348
    %v350 = vrcp.pop %v334
    %v351 = vmul.f32 %v334, %v350
    %v352 = vsub.f32 1.0, %v351
    %v353 = vmul.f32 %v350, %v352
    %v354 = vadd.f32 %v350, %v353
    %vm355 = vweird.f32 %v334
    %vm356 = vweird.f32 %v350
    %vm357 = vmor %vm355, %vm356
    %v358 = vsel %vm357, %v350, %v354
    %v359 = vand.u32 2147483647, %v334
    %vm360 = vcmp.eq.f32.partialorder %v359, 8.507059e+37
    %v361 = vand.u32 %v334, 2147483648
    %v362 = vor.u32 1.1754944e-38, %v361
    %v363 = vsel %vm360, %v362, %v358
    %v364 = vmul.f32 1.0, %v363
    %v365 = vmul.f32 %v305, %v349
    %v366 = vmul.f32 %v325, %v364
    %v367 = vadd.f32 %v365, %v245
    %v368 = vadd.f32 %v366, %v246
    %v369 = vld [vmem:[%s1] sm:$0xff]
    %370 = vmatpush.msra.mxu0 %v278
    %371 = vmatpush.msra.mxu0 %v276
    %372 = vmatpush.msra.mxu0 %v274
    %373 = vmatpush.msra.mxu0 %v272
    %374 = vmatpush.msra.mxu0 %v270
    %375 = vmatpush.msra.mxu0 %v268
    %376 = vmatpush.msra.mxu0 %v266
    %377 = vmatpush.msra.mxu0 %v264
    %378 = vmatpush.msra.mxu0 %v262
    %379 = vmatpush.msra.mxu0 %v260
    %380 = vmatpush.msra.mxu0 %v258
    %381 = vmatpush.msra.mxu0 %v256
    %382 = vmatpush.msra.mxu0 %v254
    %383 = vmatpush.msra.mxu0 %v252
    %384 = vmatpush.msra.mxu0 %v250
    %385 = vmatpush.msra.mxu0 %v248
    %386 = vmatmul.f32.gmra.mxu0 %v369
    %v387 = vpop.f32.mrf.mxu0
    %v388 = vadd.f32 %v283, %v387
    %389 = vdwg.mxu0
    %390 = vmatpush.msra.mxu0 %v279
    %391 = vmatpush.msra.mxu0 %v277
    %392 = vmatpush.msra.mxu0 %v275
    %393 = vmatpush.msra.mxu0 %v273
    %394 = vmatpush.msra.mxu0 %v271
    %395 = vmatpush.msra.mxu0 %v269
    %396 = vmatpush.msra.mxu0 %v267
    %397 = vmatpush.msra.mxu0 %v265
    %398 = vmatpush.msra.mxu0 %v263
    %399 = vmatpush.msra.mxu0 %v261
    %400 = vmatpush.msra.mxu0 %v259
    %401 = vmatpush.msra.mxu0 %v257
    %402 = vmatpush.msra.mxu0 %v255
    %403 = vmatpush.msra.mxu0 %v253
    %404 = vmatpush.msra.mxu0 %v251
    %405 = vmatpush.msra.mxu0 %v249
    %406 = vmatmul.f32.gmra.mxu0 %v369
    %v407 = vpop.f32.mrf.mxu0
    %v408 = vadd.f32 %v284, %v407
    %409 = vdwg.mxu0
    %v410 = vxor.u32 %v388, 2147483648
    %v411 = vxor.u32 %v408, 2147483648
    %v412 = vmul.f32 %v410, 1.442695
    %v413 = vpow.pop %v412
    %v414 = vmul.f32 %v411, 1.442695
    %v415 = vpow.pop %v414
    %v416 = vadd.f32 %v413, 1.0
    %v417 = vadd.f32 %v415, 1.0
    %v418 = vrcp.pop %v416
    %v419 = vmul.f32 %v416, %v418
    %v420 = vsub.f32 1.0, %v419
    %v421 = vmul.f32 %v418, %v420
    %v422 = vadd.f32 %v418, %v421
    %vm423 = vweird.f32 %v416
    %vm424 = vweird.f32 %v418
    %vm425 = vmor %vm423, %vm424
    %v426 = vsel %vm425, %v418, %v422
    %v427 = vand.u32 2147483647, %v416
    %vm428 = vcmp.eq.f32.partialorder %v427, 8.507059e+37
    %v429 = vand.u32 %v416, 2147483648
    %v430 = vor.u32 1.1754944e-38, %v429
    %v431 = vsel %vm428, %v430, %v426
    %v432 = vmul.f32 1.0, %v431
    %v433 = vrcp.pop %v417
    %v434 = vmul.f32 %v417, %v433
    %v435 = vsub.f32 1.0, %v434
    %v436 = vmul.f32 %v433, %v435
    %v437 = vadd.f32 %v433, %v436
    %vm438 = vweird.f32 %v417
    %vm439 = vweird.f32 %v433
    %vm440 = vmor %vm438, %vm439
    %v441 = vsel %vm440, %v433, %v437
    %v442 = vand.u32 2147483647, %v417
    %vm443 = vcmp.eq.f32.partialorder %v442, 8.507059e+37
    %v444 = vand.u32 %v417, 2147483648
    %v445 = vor.u32 1.1754944e-38, %v444
    %v446 = vsel %vm443, %v445, %v441
    %v447 = vmul.f32 1.0, %v446
    %v448 = vmul.f32 %v388, %v432
    %v449 = vmul.f32 %v408, %v447
    %v450 = vadd.f32 %v448, %v245
    %v451 = vadd.f32 %v449, %v246
    %v452 = vld [vmem:[#allocation3] sm:$0xff]
    %v453 = vld [vmem:[#allocation3 + $0x8] sm:$0xff]
    %v454 = vld [vmem:[#allocation3 + $0x10] sm:$0xff]
    %v455 = vld [vmem:[#allocation3 + $0x18] sm:$0xff]
    %v456 = vld [vmem:[#allocation3 + $0x20] sm:$0xff]
    %v457 = vld [vmem:[#allocation3 + $0x28] sm:$0xff]
    %v458 = vld [vmem:[#allocation3 + $0x30] sm:$0xff]
    %v459 = vld [vmem:[#allocation3 + $0x38] sm:$0xff]
    %v460 = vld [vmem:[#allocation3 + $0x40] sm:$0xff]
    %v461 = vld [vmem:[#allocation3 + $0x48] sm:$0xff]
    %v462 = vld [vmem:[#allocation3 + $0x50] sm:$0xff]
    %v463 = vld [vmem:[#allocation3 + $0x58] sm:$0xff]
    %v464 = vld [vmem:[#allocation3 + $0x60] sm:$0xff]
    %v465 = vld [vmem:[#allocation3 + $0x68] sm:$0xff]
    %v466 = vld [vmem:[#allocation3 + $0x70] sm:$0xff]
    %v467 = vld [vmem:[#allocation3 + $0x78] sm:$0xff]
    %v468 = vld [vmem:[#allocation3 + $0x80] sm:$0xff]
    %v469 = vld [vmem:[#allocation3 + $0x88] sm:$0xff]
    %v470 = vld [vmem:[#allocation3 + $0x90] sm:$0xff]
    %v471 = vld [vmem:[#allocation3 + $0x98] sm:$0xff]
    %v472 = vld [vmem:[#allocation3 + $0xa0] sm:$0xff]
    %v473 = vld [vmem:[#allocation3 + $0xa8] sm:$0xff]
    %v474 = vld [vmem:[#allocation3 + $0xb0] sm:$0xff]
    %v475 = vld [vmem:[#allocation3 + $0xb8] sm:$0xff]
    %v476 = vld [vmem:[#allocation3 + $0xc0] sm:$0xff]
    %v477 = vld [vmem:[#allocation3 + $0xc8] sm:$0xff]
    %v478 = vld [vmem:[#allocation3 + $0xd0] sm:$0xff]
    %v479 = vld [vmem:[#allocation3 + $0xd8] sm:$0xff]
    %v480 = vld [vmem:[#allocation3 + $0xe0] sm:$0xff]
    %v481 = vld [vmem:[#allocation3 + $0xe8] sm:$0xff]
    %v482 = vld [vmem:[#allocation3 + $0xf0] sm:$0xff]
    %v483 = vld [vmem:[#allocation3 + $0xf8] sm:$0xff]
    %v484 = vld [vmem:[#allocation3 + $0x100] sm:$0xff]
    %v485 = vld [vmem:[#allocation3 + $0x108] sm:$0xff]
    %v486 = vld [vmem:[#allocation3 + $0x110] sm:$0xff]
    %v487 = vld [vmem:[#allocation3 + $0x118] sm:$0xff]
    %v488 = vld [vmem:[#allocation3 + $0x120] sm:$0xff]
    %v489 = vld [vmem:[#allocation3 + $0x128] sm:$0xff]
    %v490 = vld [vmem:[#allocation3 + $0x130] sm:$0xff]
    %v491 = vld [vmem:[#allocation3 + $0x138] sm:$0xff]
    %v492 = vld [vmem:[#allocation3 + $0x140] sm:$0xff]
    %v493 = vld [vmem:[#allocation3 + $0x148] sm:$0xff]
    %v494 = vld [vmem:[#allocation3 + $0x150] sm:$0xff]
    %v495 = vld [vmem:[#allocation3 + $0x158] sm:$0xff]
    %v496 = vld [vmem:[#allocation3 + $0x160] sm:$0xff]
    %v497 = vld [vmem:[#allocation3 + $0x168] sm:$0xff]
    %v498 = vld [vmem:[#allocation3 + $0x170] sm:$0xff]
    %v499 = vld [vmem:[#allocation3 + $0x178] sm:$0xff]
    %v500 = vld [vmem:[#allocation3 + $0x180] sm:$0xff]
    %v501 = vld [vmem:[#allocation3 + $0x188] sm:$0xff]
    %v502 = vld [vmem:[#allocation3 + $0x190] sm:$0xff]
    %v503 = vld [vmem:[#allocation3 + $0x198] sm:$0xff]
    %v504 = vld [vmem:[#allocation3 + $0x1a0] sm:$0xff]
    %v505 = vld [vmem:[#allocation3 + $0x1a8] sm:$0xff]
    %v506 = vld [vmem:[#allocation3 + $0x1b0] sm:$0xff]
    %v507 = vld [vmem:[#allocation3 + $0x1b8] sm:$0xff]
    %v508 = vld [vmem:[#allocation3 + $0x1c0] sm:$0xff]
    %v509 = vld [vmem:[#allocation3 + $0x1c8] sm:$0xff]
    %v510 = vld [vmem:[#allocation3 + $0x1d0] sm:$0xff]
    %v511 = vld [vmem:[#allocation3 + $0x1d8] sm:$0xff]
    %v512 = vld [vmem:[#allocation3 + $0x1e0] sm:$0xff]
    %v513 = vld [vmem:[#allocation3 + $0x1e8] sm:$0xff]
    %v514 = vld [vmem:[#allocation3 + $0x1f0] sm:$0xff]
    %v515 = vld [vmem:[#allocation3 + $0x1f8] sm:$0xff]
    %516 = vmatpush.msra.mxu0 %v482
    %517 = vmatpush.msra.mxu0 %v480
    %518 = vmatpush.msra.mxu0 %v478
    %519 = vmatpush.msra.mxu0 %v476
    %520 = vmatpush.msra.mxu0 %v474
    %521 = vmatpush.msra.mxu0 %v472
    %522 = vmatpush.msra.mxu0 %v470
    %523 = vmatpush.msra.mxu0 %v468
    %524 = vmatpush.msra.mxu0 %v466
    %525 = vmatpush.msra.mxu0 %v464
    %526 = vmatpush.msra.mxu0 %v462
    %527 = vmatpush.msra.mxu0 %v460
    %528 = vmatpush.msra.mxu0 %v458
    %529 = vmatpush.msra.mxu0 %v456
    %530 = vmatpush.msra.mxu0 %v454
    %531 = vmatpush.msra.mxu0 %v452
    %532 = vmatmul.f32.gmra.mxu0 %v450
    %v533 = vpop.f32.mrf.mxu0
    %v534 = vadd.f32 0.0, %v533
    %535 = vdwg.mxu0
    %536 = vmatpush.msra.mxu0 %v514
    %537 = vmatpush.msra.mxu0 %v512
    %538 = vmatpush.msra.mxu0 %v510
    %539 = vmatpush.msra.mxu0 %v508
    %540 = vmatpush.msra.mxu0 %v506
    %541 = vmatpush.msra.mxu0 %v504
    %542 = vmatpush.msra.mxu0 %v502
    %543 = vmatpush.msra.mxu0 %v500
    %544 = vmatpush.msra.mxu0 %v498
    %545 = vmatpush.msra.mxu0 %v496
    %546 = vmatpush.msra.mxu0 %v494
    %547 = vmatpush.msra.mxu0 %v492
    %548 = vmatpush.msra.mxu0 %v490
    %549 = vmatpush.msra.mxu0 %v488
    %550 = vmatpush.msra.mxu0 %v486
    %551 = vmatpush.msra.mxu0 %v484
    %552 = vmatmul.f32.gmra.mxu0 %v451
    %v553 = vpop.f32.mrf.mxu0
    %v554 = vadd.f32 %v534, %v553
    %555 = vdwg.mxu0
    %556 = vmatpush.msra.mxu0 %v483
    %557 = vmatpush.msra.mxu0 %v481
    %558 = vmatpush.msra.mxu0 %v479
    %559 = vmatpush.msra.mxu0 %v477
    %560 = vmatpush.msra.mxu0 %v475
    %561 = vmatpush.msra.mxu0 %v473
    %562 = vmatpush.msra.mxu0 %v471
    %563 = vmatpush.msra.mxu0 %v469
    %564 = vmatpush.msra.mxu0 %v467
    %565 = vmatpush.msra.mxu0 %v465
    %566 = vmatpush.msra.mxu0 %v463
    %567 = vmatpush.msra.mxu0 %v461
    %568 = vmatpush.msra.mxu0 %v459
    %569 = vmatpush.msra.mxu0 %v457
    %570 = vmatpush.msra.mxu0 %v455
    %571 = vmatpush.msra.mxu0 %v453
    %572 = vmatmul.f32.gmra.mxu0 %v450
    %v573 = vpop.f32.mrf.mxu0
    %v574 = vadd.f32 0.0, %v573
    %575 = vdwg.mxu0
    %576 = vmatpush.msra.mxu0 %v515
    %577 = vmatpush.msra.mxu0 %v513
    %578 = vmatpush.msra.mxu0 %v511
    %579 = vmatpush.msra.mxu0 %v509
    %580 = vmatpush.msra.mxu0 %v507
    %581 = vmatpush.msra.mxu0 %v505
    %582 = vmatpush.msra.mxu0 %v503
    %583 = vmatpush.msra.mxu0 %v501
    %584 = vmatpush.msra.mxu0 %v499
    %585 = vmatpush.msra.mxu0 %v497
    %586 = vmatpush.msra.mxu0 %v495
    %587 = vmatpush.msra.mxu0 %v493
    %588 = vmatpush.msra.mxu0 %v491
    %589 = vmatpush.msra.mxu0 %v489
    %590 = vmatpush.msra.mxu0 %v487
    %591 = vmatpush.msra.mxu0 %v485
    %592 = vmatmul.f32.gmra.mxu0 %v451
    %v593 = vpop.f32.mrf.mxu0
    %v594 = vadd.f32 %v574, %v593
    %595 = vdwg.mxu0
    %v596 = vld [vmem:[#allocation5] sm:$0xff]
    %v597 = vld [vmem:[#allocation5 + $0x8] sm:$0xff]
    %v598 = vld [vmem:[#allocation5 + $0x10] sm:$0xff]
    %v599 = vld [vmem:[#allocation5 + $0x18] sm:$0xff]
    %v600 = vld [vmem:[#allocation5 + $0x20] sm:$0xff]
    %v601 = vld [vmem:[#allocation5 + $0x28] sm:$0xff]
    %v602 = vld [vmem:[#allocation5 + $0x30] sm:$0xff]
    %v603 = vld [vmem:[#allocation5 + $0x38] sm:$0xff]
    %v604 = vld [vmem:[#allocation5 + $0x40] sm:$0xff]
    %v605 = vld [vmem:[#allocation5 + $0x48] sm:$0xff]
    %v606 = vld [vmem:[#allocation5 + $0x50] sm:$0xff]
    %v607 = vld [vmem:[#allocation5 + $0x58] sm:$0xff]
    %v608 = vld [vmem:[#allocation5 + $0x60] sm:$0xff]
    %v609 = vld [vmem:[#allocation5 + $0x68] sm:$0xff]
    %v610 = vld [vmem:[#allocation5 + $0x70] sm:$0xff]
    %v611 = vld [vmem:[#allocation5 + $0x78] sm:$0xff]
    %v612 = vld [vmem:[#allocation5 + $0x80] sm:$0xff]
    %v613 = vld [vmem:[#allocation5 + $0x88] sm:$0xff]
    %v614 = vld [vmem:[#allocation5 + $0x90] sm:$0xff]
    %v615 = vld [vmem:[#allocation5 + $0x98] sm:$0xff]
    %v616 = vld [vmem:[#allocation5 + $0xa0] sm:$0xff]
    %v617 = vld [vmem:[#allocation5 + $0xa8] sm:$0xff]
    %v618 = vld [vmem:[#allocation5 + $0xb0] sm:$0xff]
    %v619 = vld [vmem:[#allocation5 + $0xb8] sm:$0xff]
    %v620 = vld [vmem:[#allocation5 + $0xc0] sm:$0xff]
    %v621 = vld [vmem:[#allocation5 + $0xc8] sm:$0xff]
    %v622 = vld [vmem:[#allocation5 + $0xd0] sm:$0xff]
    %v623 = vld [vmem:[#allocation5 + $0xd8] sm:$0xff]
    %v624 = vld [vmem:[#allocation5 + $0xe0] sm:$0xff]
    %v625 = vld [vmem:[#allocation5 + $0xe8] sm:$0xff]
    %v626 = vld [vmem:[#allocation5 + $0xf0] sm:$0xff]
    %v627 = vld [vmem:[#allocation5 + $0xf8] sm:$0xff]
    %628 = vmatpush.msra.mxu0 %v611
    %629 = vmatpush.msra.mxu0 %v610
    %630 = vmatpush.msra.mxu0 %v609
    %631 = vmatpush.msra.mxu0 %v608
    %632 = vmatpush.msra.mxu0 %v607
    %633 = vmatpush.msra.mxu0 %v606
    %634 = vmatpush.msra.mxu0 %v605
    %635 = vmatpush.msra.mxu0 %v604
    %636 = vmatpush.msra.mxu0 %v603
    %637 = vmatpush.msra.mxu0 %v602
    %638 = vmatpush.msra.mxu0 %v601
    %639 = vmatpush.msra.mxu0 %v600
    %640 = vmatpush.msra.mxu0 %v599
    %641 = vmatpush.msra.mxu0 %v598
    %642 = vmatpush.msra.mxu0 %v597
    %643 = vmatpush.msra.mxu0 %v596
    %644 = vmatmul.f32.gmra.mxu0 %v367
    %v645 = vpop.f32.mrf.mxu0
    %v646 = vadd.f32 0.0, %v645
    %647 = vdwg.mxu0
    %648 = vmatpush.msra.mxu0 %v627
    %649 = vmatpush.msra.mxu0 %v626
    %650 = vmatpush.msra.mxu0 %v625
    %651 = vmatpush.msra.mxu0 %v624
    %652 = vmatpush.msra.mxu0 %v623
    %653 = vmatpush.msra.mxu0 %v622
    %654 = vmatpush.msra.mxu0 %v621
    %655 = vmatpush.msra.mxu0 %v620
    %656 = vmatpush.msra.mxu0 %v619
    %657 = vmatpush.msra.mxu0 %v618
    %658 = vmatpush.msra.mxu0 %v617
    %659 = vmatpush.msra.mxu0 %v616
    %660 = vmatpush.msra.mxu0 %v615
    %661 = vmatpush.msra.mxu0 %v614
    %662 = vmatpush.msra.mxu0 %v613
    %663 = vmatpush.msra.mxu0 %v612
    %664 = vmatmul.f32.gmra.mxu0 %v368
    %v665 = vpop.f32.mrf.mxu0
    %v666 = vadd.f32 %v646, %v665
    %667 = vdwg.mxu0
    %668 = vst [vmem:[#allocation2] sm:$0x1] 0.0
    %669 = vst [vmem:[#allocation2 + $0x1] sm:$0xff] %v554
    %v670 = vld [vmem:[#allocation2] sm:$0xff]
    %v671 = vadd.f32 %v670, %v666
    %v672 = vadd.f32 %v671, %v594
    %v673 = vld [vmem:[%s10 + $0x3] ss:$0 sm:$0xff]
    %v674 = vadd.f32 %v672, %v673
    %v675 = vxor.u32 %v674, 2147483648
    %v676 = vmul.f32 %v675, 1.442695
    %v677 = vpow.pop %v676
    %v678 = vadd.f32 %v677, 1.0
    %v679 = vrcp.pop %v678
    %v680 = vmul.f32 %v678, %v679
    %v681 = vsub.f32 1.0, %v680
    %v682 = vmul.f32 %v679, %v681
    %v683 = vadd.f32 %v679, %v682
    %vm684 = vweird.f32 %v678
    %vm685 = vweird.f32 %v679
    %vm686 = vmor %vm684, %vm685
    %v687 = vsel %vm686, %v679, %v683
    %v688 = vand.u32 2147483647, %v678
    %vm689 = vcmp.eq.f32.partialorder %v688, 8.507059e+37
    %v690 = vand.u32 %v678, 2147483648
    %v691 = vor.u32 1.1754944e-38, %v690
    %v692 = vsel %vm689, %v691, %v687
    %v693 = vmul.f32 1.0, %v692
    %v694 = vmul.f32 %v674, %v693
    %v695 = vld [vmem:[%s3] sm:$0xf]
    %v696 = vld [vmem:[%s9] sm:$0xff]
    %v697 = vld [vmem:[%s9 + $0x8] sm:$0xff]
    %v698 = vld [vmem:[%s9 + $0x10] sm:$0xff]
    %v699 = vld [vmem:[%s9 + $0x18] sm:$0xff]
    %v700 = vld [vmem:[%s9 + $0x20] sm:$0xff]
    %v701 = vld [vmem:[%s9 + $0x28] sm:$0xff]
    %v702 = vld [vmem:[%s9 + $0x30] sm:$0xff]
    %v703 = vld [vmem:[%s9 + $0x38] sm:$0xff]
    %v704 = vld [vmem:[%s9 + $0x40] sm:$0xff]
    %v705 = vld [vmem:[%s9 + $0x48] sm:$0xff]
    %v706 = vld [vmem:[%s9 + $0x50] sm:$0xff]
    %v707 = vld [vmem:[%s9 + $0x58] sm:$0xff]
    %v708 = vld [vmem:[%s9 + $0x60] sm:$0xff]
    %v709 = vld [vmem:[%s9 + $0x68] sm:$0xff]
    %v710 = vld [vmem:[%s9 + $0x70] sm:$0xff]
    %v711 = vld [vmem:[%s9 + $0x78] sm:$0xff]
    %v712 = vld [vmem:[%s10 + $0x4] ss:$0 sm:$0xff]
    %713 = vmatpush.msra.mxu0 %v711
    %714 = vmatpush.msra.mxu0 %v710
    %715 = vmatpush.msra.mxu0 %v709
    %716 = vmatpush.msra.mxu0 %v708
    %717 = vmatpush.msra.mxu0 %v707
    %718 = vmatpush.msra.mxu0 %v706
    %719 = vmatpush.msra.mxu0 %v705
    %720 = vmatpush.msra.mxu0 %v704
    %721 = vmatpush.msra.mxu0 %v703
    %722 = vmatpush.msra.mxu0 %v702
    %723 = vmatpush.msra.mxu0 %v701
    %724 = vmatpush.msra.mxu0 %v700
    %725 = vmatpush.msra.mxu0 %v699
    %726 = vmatpush.msra.mxu0 %v698
    %727 = vmatpush.msra.mxu0 %v697
    %728 = vmatpush.msra.mxu0 %v696
    %729 = vmatmul.f32.gmra.mxu0 %v695
    %v730 = vpop.f32.mrf.mxu0
    %v731 = vadd.f32 %v712, %v730
    %732 = vdwg.mxu0
    %v733 = vxor.u32 %v731, 2147483648
    %v734 = vmul.f32 %v733, 1.442695
    %v735 = vpow.pop %v734
    %v736 = vadd.f32 %v735, 1.0
    %v737 = vrcp.pop %v736
    %v738 = vmul.f32 %v736, %v737
    %v739 = vsub.f32 1.0, %v738
    %v740 = vmul.f32 %v737, %v739
    %v741 = vadd.f32 %v737, %v740
    %vm742 = vweird.f32 %v736
    %vm743 = vweird.f32 %v737
    %vm744 = vmor %vm742, %vm743
    %v745 = vsel %vm744, %v737, %v741
    %v746 = vand.u32 2147483647, %v736
    %vm747 = vcmp.eq.f32.partialorder %v746, 8.507059e+37
    %v748 = vand.u32 %v736, 2147483648
    %v749 = vor.u32 1.1754944e-38, %v748
    %v750 = vsel %vm747, %v749, %v745
    %v751 = vmul.f32 1.0, %v750
    %v752 = vmul.f32 %v731, %v751
    %v753 = vadd.f32 %v694, %v127
    %v754 = vperm.slane %v752, 0
    %v755 = vadd.f32 %v753, %v754
    %756 = vst [vmem:[%s11] sm:$0x3] %v755
    %v757 = vperm.slane %v752, 1
    %v758 = vadd.f32 %v753, %v757
    %759 = vst [vmem:[%s11] sm:$0xc] %v758
    %v760 = vperm.slane %v752, 2
    %v761 = vadd.f32 %v753, %v760
    %762 = vst [vmem:[%s11] sm:$0x30] %v761
    %v763 = vperm.slane %v752, 3
    %v764 = vadd.f32 %v753, %v763
    %765 = vst [vmem:[%s11] sm:$0xc0] %v764
    // Predicated region
    $region54: #{dpe_forward.1} parent=1 // pred_check
      _
    $region55: #{dpe_forward.1} parent=1 // pred_check_branch
      %767 = sbr.rel (0) target = $region57
    $region56: #{dpe_forward.1} parent=1 // pred_region
      _
    $region57: #{dpe_forward.1} parent=1 // pred_fallthru
      _
    // Predicated region
    $region58: #{dpe_forward.1} parent=1 // pred_check
      _
    $region59: #{dpe_forward.1} parent=1 // pred_check_branch
      %769 = sbr.rel (0) target = $region61
    $region60: #{dpe_forward.1} parent=1 // pred_region
      _
    $region61: #{dpe_forward.1} parent=1 // pred_fallthru
      _
    %770 = vsyncpa [#allocation4], 1
    %771 = vsyncpa [#allocation6], 1

</llo_original>
